<compile_context>
chip_gen: v6e
topology: v6e:2x2x1
jax: 0.10.0
libtpu: 0.0.40
codegen_flags: <defaults>
</compile_context>

<pallas_src>
import jax
import jax.numpy as jnp
from jax.experimental import pallas as pl
from jax.experimental.pallas import tpu as pltpu

IN_FEATURES = 2
OUT_FEATURES = 3


def linear_bias_kernel(xt_ref, w_ref, b_ref, ot_ref):
    # xt_ref: (IN, tb)   w_ref: (OUT, IN)   b_ref: (OUT, 1)   ot_ref: (OUT, tb)
    xt = xt_ref[...]
    w = w_ref[...]
    b = b_ref[...]
    # K=2 contraction unrolled on the VPU: two broadcast FMAs over the lane-dense
    # (OUT, tb) tile, plus the bias broadcast.
    ot = w[:, 0:1] * xt[0:1, :] + w[:, 1:2] * xt[1:2, :] + b
    ot_ref[...] = ot.astype(ot_ref.dtype)


def model_with_bias(x, weight, bias, *, tb=None):
    """x: (B, 2); weight: (3, 2) (PyTorch nn.Linear layout); bias: (3,). Returns (B, 3)."""
    B = x.shape[0]

    # Batch tile on the lane axis: single exact block for small/medium B
    # (block dims == array dims -> legal for any B), 8192-lane tiles otherwise
    # (multiple of 128, partial last block handled by Pallas).
    if tb is None:
        tb = B if B <= 8192 else 8192
    grid = (pl.cdiv(B, tb),)

    # Tiny wrapper-side layout plumbing (<= 20 B/row); weight needs no reshape.
    xt = x.T                                               # (IN, B), lane-dense
    w = weight.astype(x.dtype)                             # (OUT, IN)
    b2 = bias.astype(x.dtype).reshape(OUT_FEATURES, 1)     # (OUT, 1)

    yt = pl.pallas_call(
        linear_bias_kernel,
        out_shape=jax.ShapeDtypeStruct((OUT_FEATURES, B), x.dtype),
        grid=grid,
        in_specs=[
            pl.BlockSpec((IN_FEATURES, tb), lambda i: (0, i)),
            pl.BlockSpec((OUT_FEATURES, IN_FEATURES), lambda i: (0, 0)),
            pl.BlockSpec((OUT_FEATURES, 1), lambda i: (0, 0)),
        ],
        out_specs=pl.BlockSpec((OUT_FEATURES, tb), lambda i: (0, i)),
        compiler_params=pltpu.CompilerParams(
            dimension_semantics=("parallel",),
        ),
    )(xt, w, b2)

    # y^T (3, B) -> y (B, 3) outside the kernel (negligible traffic).
    return yt.T


def init_params(key):
    # Deterministic init mimicking nn.Linear default: U(-1/sqrt(fan_in), 1/sqrt(fan_in))
    kw, kb = jax.random.split(key)
    bound = 1.0 / jnp.sqrt(jnp.float32(IN_FEATURES))
    weight = jax.random.uniform(
        kw, (OUT_FEATURES, IN_FEATURES), jnp.float32, -bound, bound)
    bias = jax.random.uniform(
        kb, (OUT_FEATURES,), jnp.float32, -bound, bound)
    return weight, bias


if __name__ == "__main__":
    key = jax.random.PRNGKey(0)
    k_x, k_params = jax.random.split(key)

    batch = 8
    x = jax.random.normal(k_x, (batch, IN_FEATURES), dtype=jnp.float32)
    weight, bias = init_params(k_params)

    y = model_with_bias(x, weight, bias)
    y = jax.block_until_ready(y)

    # Correctness check against plain-JAX reference (same semantics as PyTorch Linear).
    y_ref = x @ weight.T + bias
    assert y.shape == (batch, OUT_FEATURES)
    assert jnp.allclose(y, y_ref, atol=1e-5, rtol=1e-5)

    print("KERNEL_OK")
</pallas_src>

<mosaic_0001>
module attributes {stable_mosaic.version = 11 : i64} {
  func.func @linear_bias_kernel(%arg0: i32, %arg1: memref<2x8xf32, #tpu.memory_space<vmem>>, %arg2: memref<3x2xf32, #tpu.memory_space<vmem>>, %arg3: memref<3x1xf32, #tpu.memory_space<vmem>>, %arg4: memref<3x8xf32, #tpu.memory_space<vmem>>) attributes {dimension_semantics = [#tpu.dimension_semantics<parallel>], iteration_bounds = array<i64: 1>, scalar_prefetch = 0 : i64, scratch_operands = 0 : i64, tpu.core_type = #tpu.core_type<tc>, window_params = [{transform_indices = @transform_0, window_bounds = array<i64: 2, 8>}, {pipeline_mode = #tpu.pipeline_mode<synchronous>, transform_indices = @transform_1, window_bounds = array<i64: 3, 2>}, {pipeline_mode = #tpu.pipeline_mode<synchronous>, transform_indices = @transform_2, window_bounds = array<i64: 3, 1>}, {transform_indices = @transform_3, window_bounds = array<i64: 3, 8>}]} {
    %c0 = arith.constant 0 : index
    %c0_0 = arith.constant 0 : index
    %0 = vector.load %arg1[%c0, %c0_0] : memref<2x8xf32, #tpu.memory_space<vmem>>, vector<2x8xf32>
    %c0_1 = arith.constant 0 : index
    %c0_2 = arith.constant 0 : index
    %1 = vector.load %arg2[%c0_1, %c0_2] : memref<3x2xf32, #tpu.memory_space<vmem>>, vector<3x2xf32>
    %c0_3 = arith.constant 0 : index
    %c0_4 = arith.constant 0 : index
    %2 = vector.load %arg3[%c0_3, %c0_4] : memref<3x1xf32, #tpu.memory_space<vmem>>, vector<3x1xf32>
    %3 = vector.extract_strided_slice %1 {offsets = [0, 0], sizes = [3, 1], strides = [1, 1]} : vector<3x2xf32> to vector<3x1xf32>
    %4 = vector.extract_strided_slice %0 {offsets = [0, 0], sizes = [1, 8], strides = [1, 1]} : vector<2x8xf32> to vector<1x8xf32>
    %5 = vector.broadcast %3 : vector<3x1xf32> to vector<3x8xf32>
    %6 = vector.broadcast %4 : vector<1x8xf32> to vector<3x8xf32>
    %7 = arith.mulf %5, %6 : vector<3x8xf32>
    %8 = vector.extract_strided_slice %1 {offsets = [0, 1], sizes = [3, 1], strides = [1, 1]} : vector<3x2xf32> to vector<3x1xf32>
    %9 = vector.extract_strided_slice %0 {offsets = [1, 0], sizes = [1, 8], strides = [1, 1]} : vector<2x8xf32> to vector<1x8xf32>
    %10 = vector.broadcast %8 : vector<3x1xf32> to vector<3x8xf32>
    %11 = vector.broadcast %9 : vector<1x8xf32> to vector<3x8xf32>
    %12 = arith.mulf %10, %11 : vector<3x8xf32>
    %13 = arith.addf %7, %12 : vector<3x8xf32>
    %14 = vector.broadcast %2 : vector<3x1xf32> to vector<3x8xf32>
    %15 = arith.addf %13, %14 : vector<3x8xf32>
    %c0_5 = arith.constant 0 : index
    %c0_6 = arith.constant 0 : index
    %16 = vector.load %arg4[%c0_5, %c0_6] : memref<3x8xf32, #tpu.memory_space<vmem>>, vector<3x8xf32>
    tpu.vector_store %arg4[%c0_5, %c0_6], %15 {strides = array<i32>} : memref<3x8xf32, #tpu.memory_space<vmem>>, vector<3x8xf32>,
    return
  }
  func.func @transform_0(%arg0: i32) -> (i32, i32) {
    %c0_i32 = arith.constant 0 : i32
    %c0_i32_0 = arith.constant 0 : i32
    return %c0_i32, %arg0 : i32, i32
  }
  func.func @transform_1(%arg0: i32) -> (i32, i32) {
    %c0_i32 = arith.constant 0 : i32
    %c0_i32_0 = arith.constant 0 : i32
    %c0_i32_1 = arith.constant 0 : i32
    return %c0_i32, %c0_i32_0 : i32, i32
  }
  func.func @transform_2(%arg0: i32) -> (i32, i32) {
    %c0_i32 = arith.constant 0 : i32
    %c0_i32_0 = arith.constant 0 : i32
    %c0_i32_1 = arith.constant 0 : i32
    return %c0_i32, %c0_i32_0 : i32, i32
  }
  func.func @transform_3(%arg0: i32) -> (i32, i32) {
    %c0_i32 = arith.constant 0 : i32
    %c0_i32_0 = arith.constant 0 : i32
    return %c0_i32, %arg0 : i32, i32
  }
}

</mosaic_0001>

<llo_original>
// kernel: tpu_custom_call.1
$region0: #{tpu_custom_call.1}
  #allocation0 [shape = 'u32[]', space=smem, size = 0x4, offset = 0x4, fixed_abs, tag = 'smem constant byte address 0x4 - core index']
  #allocation1 [shape = 'u32[144,128]{1,0:T(1,128)}', space=vmem, size = 0x12000, scoped, tag = 'internal scratch']
  %s0 = inlined_call_operand.vmem [shape: f32[2,8], index: 0, kind: input, shape index: {}]
  %s1 = inlined_call_operand.vmem [shape: f32[3,2], index: 1, kind: input, shape index: {}]
  %s2 = inlined_call_operand.vmem [shape: f32[3,1], index: 2, kind: input, shape index: {}]
  %s3 = inlined_call_operand.hbm [shape: f32[3,8], index: 3, kind: output, shape index: {}]
  %s4 = sld [smem:[#allocation0]]
  $region22: #{tpu_custom_call.1} parent=0
    _
  %s6 = ssub.s32 1, %s4
  %s7 = scalar_select 0, %s6, %s4
  $region1: #{tpu_custom_call.1} parent=0
    #allocation2 [shape = 'u8[2048]{0}', space=vmem, size = 0x800, scoped, tag = 'output window, operand 0, single buffered']
    #allocation3 [shape = 's32[1]{0}', space=sflag, size = 0x4, scoped, tag = 'scoped memory for tpu_custom_call.1']
    %8 = vsyncpa [#allocation3], 0
    // Predicated region
    $region2: #{tpu_custom_call.1} parent=1 // pred_check
      _
    $region3: #{tpu_custom_call.1} parent=1 // pred_check_branch
      %10 = sbr.rel (0) target = $region5
    $region4: #{tpu_custom_call.1} parent=1 // pred_region
      _
    $region5: #{tpu_custom_call.1} parent=1 // pred_fallthru
      _
    // Predicated region
    $region6: #{tpu_custom_call.1} parent=1 // pred_check
      _
    $region7: #{tpu_custom_call.1} parent=1 // pred_check_branch
      %12 = sbr.rel (0) target = $region9
    $region8: #{tpu_custom_call.1} parent=1 // pred_region
      _
    $region9: #{tpu_custom_call.1} parent=1 // pred_fallthru
      _
    // Predicated region
    $region10: #{tpu_custom_call.1} parent=1 // pred_check
      _
    $region11: #{tpu_custom_call.1} parent=1 // pred_check_branch
      %14 = sbr.rel (0) target = $region13
    $region12: #{tpu_custom_call.1} parent=1 // pred_region
      _
    $region13: #{tpu_custom_call.1} parent=1 // pred_fallthru
      _
    %v15 = vld [vmem:[%s0] sm:$0x3]
    %v16 = vld [vmem:[%s1] sm:$0x7]
    %v17 = vld [vmem:[%s2] sm:$0x7]
    %19 = vset.pattern.permute.xlu0 0
    %20 = vperm.xlu0 %19, %v16
    %v21 = vpop.permute.xlu0 %20
    %v23 = vlaneseq
    %v24 = vshrl.u32 %v23, 7
    %v25 = vsub.s32 0, %v24
    %v26 = vrot.slane %v15, %v25
    %v27 = vmul.f32 %v21, %v26
    %28 = vset.pattern.permute.xlu0 1
    %29 = vperm.xlu0 %28, %v16
    %v30 = vpop.permute.xlu0 %29
    %v32 = vlaneseq
    %v33 = vshrl.u32 %v32, 7
    %v34 = vsub.s32 1, %v33
    %v35 = vrot.slane %v15, %v34
    %v36 = vmul.f32 %v30, %v35
    %v37 = vadd.f32 %v27, %v36
    %39 = vset.pattern.permute.xlu0 0
    %40 = vperm.xlu0 %39, %v17
    %v41 = vpop.permute.xlu0 %40
    %v43 = vadd.f32 %v37, %v41
    %vm44 = vcmask 59392
    %45 = vst.msk [vmem:[#allocation2] sm:$0x7] %vm44, %v43
    // Predicated region
    $region14: #{tpu_custom_call.1} parent=1 // pred_check
      _
    $region15: #{tpu_custom_call.1} parent=1 // pred_check_branch
      %47 = sbr.rel (0) target = $region17
    $region16: #{tpu_custom_call.1} parent=1 // pred_region
      %s49 = ssub.s32 64, 64
      %50 = vsyncadd [#allocation3], %s49
      %s52 = sshll.u32 [#allocation2], 4
      %s53 = int_to_ptr.vmem [resolvable:$true] %s52
      %55 = dma.vmem_to_hbm [thread:$0]  %s53, 64, %s3, [#allocation3]
    $region17: #{tpu_custom_call.1} parent=1 // pred_fallthru
      _
    // Predicated region
    $region18: #{tpu_custom_call.1} parent=1 // pred_check
      _
    $region19: #{tpu_custom_call.1} parent=1 // pred_check_branch
      %57 = sbr.rel (0) target = $region21
    $region20: #{tpu_custom_call.1} parent=1 // pred_region
      %58 = dma.done [#allocation3], 64
    $region21: #{tpu_custom_call.1} parent=1 // pred_fallthru
      _
    %59 = vsyncpa [#allocation3], 1

</llo_original>
